<compile_context>
chip_gen: v7x
topology: tpu7x:2x2x1
jax: 0.10.0
libtpu: 0.0.40
codegen_flags: <defaults>
</compile_context>

<pallas_src>
import functools

import jax
import jax.numpy as jnp
import numpy as np
from jax.experimental import pallas as pl
from jax.experimental.pallas import tpu as pltpu


def _ppes2_loss_kernel(y_per_ref, lab_ref,
                       y_sm_ref, x_sm_ref, sc_sm_ref,
                       y_al_ref, x_al_ref, m_al_ref,
                       y_ai_ref, x_ai_ref, m_ai_ref,
                       out_ref,
                       acc_al_ref, acc_ai_ref,
                       *, batch, row_tile, person_loss_enabled, mask_rows):
    step = pl.program_id(0)
    last = pl.num_programs(0) - 1

    # ---- init accumulators on the first grid step ---------------------------
    @pl.when(step == 0)
    def _init():
        acc_al_ref[...] = jnp.zeros_like(acc_al_ref)
        acc_ai_ref[...] = jnp.zeros_like(acc_ai_ref)

    # ---- optional row-validity mask for a ragged last tile ------------------
    if mask_rows:
        rows = step * row_tile + jax.lax.broadcasted_iota(
            jnp.int32, (row_tile, 1), 0)
        valid = (rows < batch).astype(jnp.float32)
    else:
        valid = None

    # ---- masked-MSE partial sums: VPU mul/add + sublane-only reduce ----------
    def accumulate(y_ref, x_ref, m_ref, acc_ref):
        d = (y_ref[...].astype(jnp.float32) - x_ref[...].astype(jnp.float32)) \
            * m_ref[...].astype(jnp.float32)       # (y - x) * m : one multiply
        d2 = d * d
        if valid is not None:
            d2 = d2 * valid
        # reduce over rows only -> per-lane partials; final cross-lane reduce
        # happens once at the end.
        acc_ref[...] += jnp.sum(d2, axis=0, keepdims=True)

    accumulate(y_al_ref, x_al_ref, m_al_ref, acc_al_ref)
    accumulate(y_ai_ref, x_ai_ref, m_ai_ref, acc_ai_ref)

    # ---- finalize on the last grid step --------------------------------------
    @pl.when(step == last)
    def _finalize():
        n = jnp.float32(batch)

        # Small MSE losses: per-column scale already holds weight / elem_count,
        # padded columns have scale 0.
        dsm = y_sm_ref[...] - x_sm_ref[...]
        total = jnp.sum(sc_sm_ref[...] * dsm * dsm)

        # Masked MSE losses: sum((y*m - x*m)^2) / batch, weighted.
        total = total + 0.1 * (jnp.sum(acc_al_ref[...]) / n)
        total = total + 0.01 * (jnp.sum(acc_ai_ref[...]) / n)

        if person_loss_enabled:
            # CrossEntropyLoss (mean over batch), numerically stable,
            # target gather via iota-compare (no one-hot input).
            logits = y_per_ref[...].astype(jnp.float32)          # (N, P)
            labels = lab_ref[...]                                # (N, 1) int32
            rmax = jnp.max(logits, axis=-1, keepdims=True)
            lse = jnp.log(jnp.sum(jnp.exp(logits - rmax),
                                  axis=-1, keepdims=True)) + rmax
            cols = jax.lax.broadcasted_iota(jnp.int32, logits.shape, 1)
            tgt = jnp.sum(jnp.where(cols == labels, logits, 0.0),
                          axis=-1, keepdims=True)
            loss_person = jnp.sum(lse - tgt) / n
            total = total + 0.1 * loss_person

        out_ref[0] = total


def ppes2_loss(y_per, x_per, y_po1, x_po1, y_po2, x_po2, y_expr, x_expr,
               y_alignment, x_alignment, y_aligned_image, x_aligned_image,
               mask, person_loss_enabled=True, row_tile=None,
               vmem_limit_bytes=32 * 1024 * 1024):
    """Wrapper: free reshapes + tiny lane-padding glue; all heavy math in-kernel."""
    N, P = y_per.shape
    H, W = mask.shape[-2:]
    HW = H * W
    C1 = y_alignment.shape[1]
    C2 = y_aligned_image.shape[1]

    labels = x_per.reshape(N, 1).astype(jnp.int32)

    # Consolidate the three small MSE pairs into one lane-padded slab with a
    # per-column scale = weight / element_count (exact for mean-MSE).
    d1, d2, de = y_po1.shape[1], y_po2.shape[1], y_expr.shape[1]
    y_small = jnp.concatenate(
        [y_po1.astype(jnp.float32), y_po2.astype(jnp.float32),
         y_expr.astype(jnp.float32)], axis=1)
    x_small = jnp.concatenate(
        [x_po1.astype(jnp.float32), x_po2.astype(jnp.float32),
         x_expr.astype(jnp.float32)], axis=1)
    scale = jnp.concatenate(
        [jnp.full((1, d1), 10.0 / (N * d1), jnp.float32),
         jnp.full((1, d2), 100.0 / (N * d2), jnp.float32),
         jnp.full((1, de), 100.0 / (N * de), jnp.float32)], axis=1)
    dtot = d1 + d2 + de
    dpad = ((dtot + 127) // 128) * 128
    if dpad != dtot:
        padcfg = ((0, 0), (0, dpad - dtot))
        y_small = jnp.pad(y_small, padcfg)
        x_small = jnp.pad(x_small, padcfg)
        scale = jnp.pad(scale, padcfg)

    # Free, contiguous reshapes: NCHW -> (N, C*H*W) (lane axis dense).
    y_al2 = y_alignment.reshape(N, C1 * HW)
    x_al2 = x_alignment.reshape(N, C1 * HW)
    y_ai2 = y_aligned_image.reshape(N, C2 * HW)
    x_ai2 = x_aligned_image.reshape(N, C2 * HW)
    mask_hw = mask.reshape(1, HW).astype(jnp.float32)
    m_al = jnp.tile(mask_hw, (1, C1))
    m_ai = jnp.tile(mask_hw, (1, C2))

    # ---- row-tile selection: keep (4 big blocks) x 2 buffers well under the
    # ---- scoped VMEM limit on every generation (v5e/v6e/v7x).
    bpr = ((y_al2.dtype.itemsize + x_al2.dtype.itemsize) * C1 * HW
           + (y_ai2.dtype.itemsize + x_ai2.dtype.itemsize) * C2 * HW)
    if row_tile is None:
        budget = 6 << 20                       # bytes per single buffer set
        tb = max(8, (budget // max(bpr, 1)) // 8 * 8)
    else:
        tb = max(1, int(row_tile))
    if tb >= N:
        tb = N                                 # single full block
    else:
        tb = max(8, (tb // 8) * 8)             # blocked dims must be 8-aligned
        if tb >= N:
            tb = N
    num_tiles = (N + tb - 1) // tb
    mask_rows = (N % tb) != 0

    kernel = functools.partial(
        _ppes2_loss_kernel, batch=N, row_tile=tb,
        person_loss_enabled=person_loss_enabled, mask_rows=mask_rows)

    def const_spec(shape):
        return pl.BlockSpec(shape, lambda i: (0, 0))

    grid_spec = pltpu.PrefetchScalarGridSpec(
        num_scalar_prefetch=0,
        grid=(num_tiles,),
        in_specs=[
            const_spec((N, P)),                                  # y_per
            const_spec((N, 1)),                                  # labels
            const_spec((N, dpad)),                               # y_small
            const_spec((N, dpad)),                               # x_small
            const_spec((1, dpad)),                               # scale
            pl.BlockSpec((tb, C1 * HW), lambda i: (i, 0)),       # y_alignment
            pl.BlockSpec((tb, C1 * HW), lambda i: (i, 0)),       # x_alignment
            const_spec((1, C1 * HW)),                            # mask (C1 tiled)
            pl.BlockSpec((tb, C2 * HW), lambda i: (i, 0)),       # y_aligned_image
            pl.BlockSpec((tb, C2 * HW), lambda i: (i, 0)),       # x_aligned_image
            const_spec((1, C2 * HW)),                            # mask (C2 tiled)
        ],
        out_specs=pl.BlockSpec(memory_space=pltpu.MemorySpace.SMEM),
        scratch_shapes=[
            pltpu.VMEM((1, C1 * HW), jnp.float32),               # per-lane acc
            pltpu.VMEM((1, C2 * HW), jnp.float32),               # per-lane acc
        ],
    )

    out = pl.pallas_call(
        kernel,
        out_shape=jax.ShapeDtypeStruct((1,), jnp.float32),
        grid_spec=grid_spec,
        compiler_params=pltpu.CompilerParams(
            # grid axis is a reduction into shared scratch -> must be sequential
            dimension_semantics=("arbitrary",),
            vmem_limit_bytes=vmem_limit_bytes),
    )(y_per, labels, y_small, x_small, scale,
      y_al2, x_al2, m_al, y_ai2, x_ai2, m_ai)
    return out[0]


def ppes2_loss_ref(y_per, x_per, y_po1, x_po1, y_po2, x_po2, y_expr, x_expr,
                   y_alignment, x_alignment, y_aligned_image, x_aligned_image,
                   mask, person_loss_enabled=True):
    """Pure-JAX reference mirroring the PyTorch module semantics."""
    n = y_per.shape[0]
    log_probs = jax.nn.log_softmax(y_per, axis=-1)
    loss_person = -jnp.mean(log_probs[jnp.arange(n), x_per])

    mse = lambda a, b: jnp.mean((a - b) ** 2)
    loss_pose1 = mse(y_po1, x_po1)
    loss_pose2 = mse(y_po2, x_po2)
    loss_expr = mse(y_expr, x_expr)

    def masked(a, b):
        l = (a * mask - b * mask) ** 2
        l = l.sum(axis=(2, 3))
        return l.sum() / l.shape[0]

    loss_alignment = masked(y_alignment, x_alignment)
    loss_aligned_image = masked(y_aligned_image, x_aligned_image)

    loss = (10.0 * loss_pose1 + 100.0 * loss_pose2 + 100.0 * loss_expr
            + 0.1 * loss_alignment + 0.01 * loss_aligned_image)
    if person_loss_enabled:
        loss = loss + 0.1 * loss_person
    return loss


if __name__ == "__main__":
    key = jax.random.PRNGKey(0)
    N, P = 16, 16          # batch, number of person classes
    D1, D2, DE = 4, 4, 8   # pose1, pose2, expression feature dims
    C1, C2, H, W = 4, 3, 16, 16

    ks = jax.random.split(key, 12)
    y_per = jax.random.normal(ks[0], (N, P), jnp.float32)
    x_per = jax.random.randint(ks[1], (N,), 0, P)
    y_po1 = jax.random.normal(ks[2], (N, D1), jnp.float32)
    x_po1 = jax.random.normal(ks[3], (N, D1), jnp.float32)
    y_po2 = jax.random.normal(ks[4], (N, D2), jnp.float32)
    x_po2 = jax.random.normal(ks[5], (N, D2), jnp.float32)
    y_expr = jax.random.normal(ks[6], (N, DE), jnp.float32)
    x_expr = jax.random.normal(ks[7], (N, DE), jnp.float32)
    y_alignment = jax.random.normal(ks[8], (N, C1, H, W), jnp.float32)
    x_alignment = jax.random.normal(ks[9], (N, C1, H, W), jnp.float32)
    y_aligned_image = jax.random.normal(ks[10], (N, C2, H, W), jnp.float32)
    x_aligned_image = jax.random.normal(ks[11], (N, C2, H, W), jnp.float32)

    # Deterministic mask "parameter": ones in the central crop, zero 2-px border.
    yy = jnp.arange(H)[:, None]
    xx = jnp.arange(W)[None, :]
    mask = ((yy >= 2) & (yy < H - 2) & (xx >= 2) & (xx < W - 2)).astype(jnp.float32)
    mask = mask.reshape(1, 1, H, W)

    args = (y_per, x_per, y_po1, x_po1, y_po2, x_po2, y_expr, x_expr,
            y_alignment, x_alignment, y_aligned_image, x_aligned_image, mask)

    ref = ppes2_loss_ref(*args, person_loss_enabled=True)

    # Multi-step grid path (row_tile=8 -> 2 grid steps): exercises the
    # init / accumulate / finalize structure.
    loss_tiled = jax.block_until_ready(
        ppes2_loss(*args, person_loss_enabled=True, row_tile=8))
    np.testing.assert_allclose(np.asarray(loss_tiled), np.asarray(ref),
                               rtol=1e-4, atol=1e-4)

    # Auto-tiled path (whole batch fits one block -> single grid step).
    loss_auto = jax.block_until_ready(
        ppes2_loss(*args, person_loss_enabled=True))
    np.testing.assert_allclose(np.asarray(loss_auto), np.asarray(ref),
                               rtol=1e-4, atol=1e-4)

    print("KERNEL_OK")
</pallas_src>

<mosaic_0001>
module attributes {stable_mosaic.version = 11 : i64} {
  func.func @_ppes2_loss_kernel(%arg0: i32, %arg1: memref<16x16xf32, #tpu.memory_space<vmem>>, %arg2: memref<16x1xi32, #tpu.memory_space<vmem>>, %arg3: memref<16x128xf32, #tpu.memory_space<vmem>>, %arg4: memref<16x128xf32, #tpu.memory_space<vmem>>, %arg5: memref<1x128xf32, #tpu.memory_space<vmem>>, %arg6: memref<8x1024xf32, #tpu.memory_space<vmem>>, %arg7: memref<8x1024xf32, #tpu.memory_space<vmem>>, %arg8: memref<1x1024xf32, #tpu.memory_space<vmem>>, %arg9: memref<8x768xf32, #tpu.memory_space<vmem>>, %arg10: memref<8x768xf32, #tpu.memory_space<vmem>>, %arg11: memref<1x768xf32, #tpu.memory_space<vmem>>, %arg12: memref<1xf32, #tpu.memory_space<smem>>, %arg13: memref<1x1024xf32, #tpu.memory_space<vmem>>, %arg14: memref<1x768xf32, #tpu.memory_space<vmem>>) attributes {dimension_semantics = [#tpu.dimension_semantics<arbitrary>], iteration_bounds = array<i64: 2>, scalar_prefetch = 0 : i64, scratch_operands = 2 : i64, tpu.core_type = #tpu.core_type<tc>, window_params = [{pipeline_mode = #tpu.pipeline_mode<synchronous>, transform_indices = @transform_0, window_bounds = array<i64: 16, 16>}, {pipeline_mode = #tpu.pipeline_mode<synchronous>, transform_indices = @transform_1, window_bounds = array<i64: 16, 1>}, {pipeline_mode = #tpu.pipeline_mode<synchronous>, transform_indices = @transform_2, window_bounds = array<i64: 16, 128>}, {pipeline_mode = #tpu.pipeline_mode<synchronous>, transform_indices = @transform_3, window_bounds = array<i64: 16, 128>}, {pipeline_mode = #tpu.pipeline_mode<synchronous>, transform_indices = @transform_4, window_bounds = array<i64: 1, 128>}, {transform_indices = @transform_5, window_bounds = array<i64: 8, 1024>}, {transform_indices = @transform_6, window_bounds = array<i64: 8, 1024>}, {pipeline_mode = #tpu.pipeline_mode<synchronous>, transform_indices = @transform_7, window_bounds = array<i64: 1, 1024>}, {transform_indices = @transform_8, window_bounds = array<i64: 8, 768>}, {transform_indices = @transform_9, window_bounds = array<i64: 8, 768>}, {pipeline_mode = #tpu.pipeline_mode<synchronous>, transform_indices = @transform_10, window_bounds = array<i64: 1, 768>}, {transform_indices = @transform_11, window_bounds = array<i64: 1>}]} {
    %c0_i32 = arith.constant 0 : i32
    %0 = arith.cmpi eq, %arg0, %c0_i32 : i32
    %1 = arith.extui %0 : i1 to i32
    %c0_i32_0 = arith.constant 0 : i32
    %2 = arith.cmpi ne, %1, %c0_i32_0 : i32
    scf.if %2 {
      %cst_22 = arith.constant 0.000000e+00 : f32
      %30 = vector.broadcast %cst_22 : f32 to vector<1x1024xf32>
      %c0_23 = arith.constant 0 : index
      %c0_24 = arith.constant 0 : index
      %31 = vector.load %arg13[%c0_23, %c0_24] : memref<1x1024xf32, #tpu.memory_space<vmem>>, vector<1x1024xf32>
      tpu.vector_store %arg13[%c0_23, %c0_24], %30 {strides = array<i32>} : memref<1x1024xf32, #tpu.memory_space<vmem>>, vector<1x1024xf32>,
      %cst_25 = arith.constant 0.000000e+00 : f32
      %32 = vector.broadcast %cst_25 : f32 to vector<1x768xf32>
      %c0_26 = arith.constant 0 : index
      %c0_27 = arith.constant 0 : index
      %33 = vector.load %arg14[%c0_26, %c0_27] : memref<1x768xf32, #tpu.memory_space<vmem>>, vector<1x768xf32>
      tpu.vector_store %arg14[%c0_26, %c0_27], %32 {strides = array<i32>} : memref<1x768xf32, #tpu.memory_space<vmem>>, vector<1x768xf32>,
    } else {
    }
    %c0 = arith.constant 0 : index
    %c0_1 = arith.constant 0 : index
    %3 = vector.load %arg6[%c0, %c0_1] : memref<8x1024xf32, #tpu.memory_space<vmem>>, vector<8x1024xf32>
    %c0_2 = arith.constant 0 : index
    %c0_3 = arith.constant 0 : index
    %4 = vector.load %arg7[%c0_2, %c0_3] : memref<8x1024xf32, #tpu.memory_space<vmem>>, vector<8x1024xf32>
    %5 = arith.subf %3, %4 : vector<8x1024xf32>
    %c0_4 = arith.constant 0 : index
    %c0_5 = arith.constant 0 : index
    %6 = vector.load %arg8[%c0_4, %c0_5] : memref<1x1024xf32, #tpu.memory_space<vmem>>, vector<1x1024xf32>
    %7 = vector.broadcast %6 : vector<1x1024xf32> to vector<8x1024xf32>
    %8 = arith.mulf %5, %7 : vector<8x1024xf32>
    %9 = arith.mulf %8, %8 : vector<8x1024xf32>
    %c0_6 = arith.constant 0 : index
    %c0_7 = arith.constant 0 : index
    %10 = vector.load %arg13[%c0_6, %c0_7] : memref<1x1024xf32, #tpu.memory_space<vmem>>, vector<1x1024xf32>
    %cst = arith.constant dense<0.000000e+00> : vector<1024xf32>
    %11 = vector.multi_reduction <add>, %9, %cst [0] : vector<8x1024xf32> to vector<1024xf32>
    %12 = vector.shape_cast %11 : vector<1024xf32> to vector<1x1024xf32>
    %13 = arith.addf %10, %12 : vector<1x1024xf32>
    %c0_8 = arith.constant 0 : index
    %c0_9 = arith.constant 0 : index
    %14 = vector.load %arg13[%c0_8, %c0_9] : memref<1x1024xf32, #tpu.memory_space<vmem>>, vector<1x1024xf32>
    tpu.vector_store %arg13[%c0_8, %c0_9], %13 {strides = array<i32>} : memref<1x1024xf32, #tpu.memory_space<vmem>>, vector<1x1024xf32>,
    %c0_10 = arith.constant 0 : index
    %c0_11 = arith.constant 0 : index
    %15 = vector.load %arg9[%c0_10, %c0_11] : memref<8x768xf32, #tpu.memory_space<vmem>>, vector<8x768xf32>
    %c0_12 = arith.constant 0 : index
    %c0_13 = arith.constant 0 : index
    %16 = vector.load %arg10[%c0_12, %c0_13] : memref<8x768xf32, #tpu.memory_space<vmem>>, vector<8x768xf32>
    %17 = arith.subf %15, %16 : vector<8x768xf32>
    %c0_14 = arith.constant 0 : index
    %c0_15 = arith.constant 0 : index
    %18 = vector.load %arg11[%c0_14, %c0_15] : memref<1x768xf32, #tpu.memory_space<vmem>>, vector<1x768xf32>
    %19 = vector.broadcast %18 : vector<1x768xf32> to vector<8x768xf32>
    %20 = arith.mulf %17, %19 : vector<8x768xf32>
    %21 = arith.mulf %20, %20 : vector<8x768xf32>
    %c0_16 = arith.constant 0 : index
    %c0_17 = arith.constant 0 : index
    %22 = vector.load %arg14[%c0_16, %c0_17] : memref<1x768xf32, #tpu.memory_space<vmem>>, vector<1x768xf32>
    %cst_18 = arith.constant dense<0.000000e+00> : vector<768xf32>
    %23 = vector.multi_reduction <add>, %21, %cst_18 [0] : vector<8x768xf32> to vector<768xf32>
    %24 = vector.shape_cast %23 : vector<768xf32> to vector<1x768xf32>
    %25 = arith.addf %22, %24 : vector<1x768xf32>
    %c0_19 = arith.constant 0 : index
    %c0_20 = arith.constant 0 : index
    %26 = vector.load %arg14[%c0_19, %c0_20] : memref<1x768xf32, #tpu.memory_space<vmem>>, vector<1x768xf32>
    tpu.vector_store %arg14[%c0_19, %c0_20], %25 {strides = array<i32>} : memref<1x768xf32, #tpu.memory_space<vmem>>, vector<1x768xf32>,
    %c1_i32 = arith.constant 1 : i32
    %27 = arith.cmpi eq, %arg0, %c1_i32 : i32
    %28 = arith.extui %27 : i1 to i32
    %c0_i32_21 = arith.constant 0 : i32
    %29 = arith.cmpi ne, %28, %c0_i32_21 : i32
    scf.if %29 {
      %c0_22 = arith.constant 0 : index
      %c0_23 = arith.constant 0 : index
      %30 = vector.load %arg3[%c0_22, %c0_23] : memref<16x128xf32, #tpu.memory_space<vmem>>, vector<16x128xf32>
      %c0_24 = arith.constant 0 : index
      %c0_25 = arith.constant 0 : index
      %31 = vector.load %arg4[%c0_24, %c0_25] : memref<16x128xf32, #tpu.memory_space<vmem>>, vector<16x128xf32>
      %32 = arith.subf %30, %31 : vector<16x128xf32>
      %c0_26 = arith.constant 0 : index
      %c0_27 = arith.constant 0 : index
      %33 = vector.load %arg5[%c0_26, %c0_27] : memref<1x128xf32, #tpu.memory_space<vmem>>, vector<1x128xf32>
      %34 = vector.broadcast %33 : vector<1x128xf32> to vector<16x128xf32>
      %35 = arith.mulf %34, %32 : vector<16x128xf32>
      %36 = arith.mulf %35, %32 : vector<16x128xf32>
      %37 = vector.shape_cast %36 : vector<16x128xf32> to vector<1x16x128xf32>
      %cst_28 = arith.constant dense<0.000000e+00> : vector<1xf32>
      %38 = vector.multi_reduction <add>, %37, %cst_28 [1, 2] : vector<1x16x128xf32> to vector<1xf32>
      %39 = vector.shape_cast %38 : vector<1xf32> to vector<1x1x1xf32>
      %40 = vector.extract %39[0, 0, 0] : f32 from vector<1x1x1xf32>
      %c0_29 = arith.constant 0 : index
      %c0_30 = arith.constant 0 : index
      %41 = vector.load %arg13[%c0_29, %c0_30] : memref<1x1024xf32, #tpu.memory_space<vmem>>, vector<1x1024xf32>
      %42 = vector.shape_cast %41 : vector<1x1024xf32> to vector<1x1x1024xf32>
      %cst_31 = arith.constant dense<0.000000e+00> : vector<1xf32>
      %43 = vector.multi_reduction <add>, %42, %cst_31 [1, 2] : vector<1x1x1024xf32> to vector<1xf32>
      %44 = vector.shape_cast %43 : vector<1xf32> to vector<1x1x1xf32>
      %45 = vector.extract %44[0, 0, 0] : f32 from vector<1x1x1xf32>
      %cst_32 = arith.constant 1.600000e+01 : f32
      %46 = arith.divf %45, %cst_32 : f32
      %cst_33 = arith.constant 1.000000e-01 : f32
      %47 = arith.mulf %cst_33, %46 : f32
      %48 = arith.addf %40, %47 : f32
      %c0_34 = arith.constant 0 : index
      %c0_35 = arith.constant 0 : index
      %49 = vector.load %arg14[%c0_34, %c0_35] : memref<1x768xf32, #tpu.memory_space<vmem>>, vector<1x768xf32>
      %50 = vector.shape_cast %49 : vector<1x768xf32> to vector<1x1x768xf32>
      %cst_36 = arith.constant dense<0.000000e+00> : vector<1xf32>
      %51 = vector.multi_reduction <add>, %50, %cst_36 [1, 2] : vector<1x1x768xf32> to vector<1xf32>
      %52 = vector.shape_cast %51 : vector<1xf32> to vector<1x1x1xf32>
      %53 = vector.extract %52[0, 0, 0] : f32 from vector<1x1x1xf32>
      %cst_37 = arith.constant 1.600000e+01 : f32
      %54 = arith.divf %53, %cst_37 : f32
      %cst_38 = arith.constant 0.00999999977 : f32
      %55 = arith.mulf %cst_38, %54 : f32
      %56 = arith.addf %48, %55 : f32
      %c0_39 = arith.constant 0 : index
      %c0_40 = arith.constant 0 : index
      %57 = vector.load %arg1[%c0_39, %c0_40] : memref<16x16xf32, #tpu.memory_space<vmem>>, vector<16x16xf32>
      %c0_41 = arith.constant 0 : index
      %c0_42 = arith.constant 0 : index
      %58 = vector.load %arg2[%c0_41, %c0_42] : memref<16x1xi32, #tpu.memory_space<vmem>>, vector<16x1xi32>
      %cst_43 = arith.constant dense<0xFF800000> : vector<16xf32>
      %59 = vector.multi_reduction <maximumf>, %57, %cst_43 [1] : vector<16x16xf32> to vector<16xf32>
      %60 = vector.shape_cast %59 : vector<16xf32> to vector<16x1xf32>
      %61 = vector.broadcast %60 : vector<16x1xf32> to vector<16x16xf32>
      %62 = arith.subf %57, %61 : vector<16x16xf32>
      %63 = math.exp %62 : vector<16x16xf32>
      %cst_44 = arith.constant dense<0.000000e+00> : vector<16xf32>
      %64 = vector.multi_reduction <add>, %63, %cst_44 [1] : vector<16x16xf32> to vector<16xf32>
      %65 = vector.shape_cast %64 : vector<16xf32> to vector<16x1xf32>
      %66 = math.log %65 : vector<16x1xf32>
      %67 = arith.addf %66, %60 : vector<16x1xf32>
      %68 = tpu.iota {dimensions = array<i32: 1>} : vector<16x16xi32>
      %69 = vector.broadcast %58 : vector<16x1xi32> to vector<16x16xi32>
      %70 = arith.cmpi eq, %68, %69 : vector<16x16xi32>
      %cst_45 = arith.constant 0.000000e+00 : f32
      %71 = vector.broadcast %cst_45 : f32 to vector<16x16xf32>
      %72 = arith.select %70, %57, %71 : vector<16x16xi1>, vector<16x16xf32>
      %cst_46 = arith.constant dense<0.000000e+00> : vector<16xf32>
      %73 = vector.multi_reduction <add>, %72, %cst_46 [1] : vector<16x16xf32> to vector<16xf32>
      %74 = vector.shape_cast %73 : vector<16xf32> to vector<16x1xf32>
      %75 = arith.subf %67, %74 : vector<16x1xf32>
      %76 = vector.shape_cast %75 : vector<16x1xf32> to vector<1x16x1xf32>
      %cst_47 = arith.constant dense<0.000000e+00> : vector<1xf32>
      %77 = vector.multi_reduction <add>, %76, %cst_47 [1, 2] : vector<1x16x1xf32> to vector<1xf32>
      %78 = vector.shape_cast %77 : vector<1xf32> to vector<1x1x1xf32>
      %79 = vector.extract %78[0, 0, 0] : f32 from vector<1x1x1xf32>
      %cst_48 = arith.constant 1.600000e+01 : f32
      %80 = arith.divf %79, %cst_48 : f32
      %cst_49 = arith.constant 1.000000e-01 : f32
      %81 = arith.mulf %cst_49, %80 : f32
      %82 = arith.addf %56, %81 : f32
      %c0_50 = arith.constant 0 : index
      %83 = memref.load %arg12[%c0_50] : memref<1xf32, #tpu.memory_space<smem>>
      memref.store %82, %arg12[%c0_50] : memref<1xf32, #tpu.memory_space<smem>>
    } else {
    }
    return
  }
  func.func @transform_0(%arg0: i32) -> (i32, i32) {
    %c0_i32 = arith.constant 0 : i32
    %c0_i32_0 = arith.constant 0 : i32
    %c0_i32_1 = arith.constant 0 : i32
    return %c0_i32, %c0_i32_0 : i32, i32
  }
  func.func @transform_1(%arg0: i32) -> (i32, i32) {
    %c0_i32 = arith.constant 0 : i32
    %c0_i32_0 = arith.constant 0 : i32
    %c0_i32_1 = arith.constant 0 : i32
    return %c0_i32, %c0_i32_0 : i32, i32
  }
  func.func @transform_2(%arg0: i32) -> (i32, i32) {
    %c0_i32 = arith.constant 0 : i32
    %c0_i32_0 = arith.constant 0 : i32
    %c0_i32_1 = arith.constant 0 : i32
    return %c0_i32, %c0_i32_0 : i32, i32
  }
  func.func @transform_3(%arg0: i32) -> (i32, i32) {
    %c0_i32 = arith.constant 0 : i32
    %c0_i32_0 = arith.constant 0 : i32
    %c0_i32_1 = arith.constant 0 : i32
    return %c0_i32, %c0_i32_0 : i32, i32
  }
  func.func @transform_4(%arg0: i32) -> (i32, i32) {
    %c0_i32 = arith.constant 0 : i32
    %c0_i32_0 = arith.constant 0 : i32
    %c0_i32_1 = arith.constant 0 : i32
    return %c0_i32, %c0_i32_0 : i32, i32
  }
  func.func @transform_5(%arg0: i32) -> (i32, i32) {
    %c0_i32 = arith.constant 0 : i32
    %c0_i32_0 = arith.constant 0 : i32
    return %arg0, %c0_i32 : i32, i32
  }
  func.func @transform_6(%arg0: i32) -> (i32, i32) {
    %c0_i32 = arith.constant 0 : i32
    %c0_i32_0 = arith.constant 0 : i32
    return %arg0, %c0_i32 : i32, i32
  }
  func.func @transform_7(%arg0: i32) -> (i32, i32) {
    %c0_i32 = arith.constant 0 : i32
    %c0_i32_0 = arith.constant 0 : i32
    %c0_i32_1 = arith.constant 0 : i32
    return %c0_i32, %c0_i32_0 : i32, i32
  }
  func.func @transform_8(%arg0: i32) -> (i32, i32) {
    %c0_i32 = arith.constant 0 : i32
    %c0_i32_0 = arith.constant 0 : i32
    return %arg0, %c0_i32 : i32, i32
  }
  func.func @transform_9(%arg0: i32) -> (i32, i32) {
    %c0_i32 = arith.constant 0 : i32
    %c0_i32_0 = arith.constant 0 : i32
    return %arg0, %c0_i32 : i32, i32
  }
  func.func @transform_10(%arg0: i32) -> (i32, i32) {
    %c0_i32 = arith.constant 0 : i32
    %c0_i32_0 = arith.constant 0 : i32
    %c0_i32_1 = arith.constant 0 : i32
    return %c0_i32, %c0_i32_0 : i32, i32
  }
  func.func @transform_11(%arg0: i32) -> i32 {
    %c0_i32 = arith.constant 0 : i32
    %c0_i32_0 = arith.constant 0 : i32
    return %c0_i32 : i32
  }
}

</mosaic_0001>

<llo_original>
// kernel: tpu_custom_call.1
$region0: #{tpu_custom_call.1}
  #allocation0 [shape = 'u32[]', space=smem, size = 0x4, offset = 0x4, fixed_abs, tag = 'smem constant byte address 0x4 - core index']
  #allocation1 [shape = 'u32[144,128]{1,0:T(1,128)}', space=vmem, size = 0x12000, scoped, tag = 'internal scratch']
  #allocation2 [shape = 'f32[1,1024]{1,0:T(1,128)}', space=vmem, size = 0x1000, scoped, tag = 'scratch operand']
  #allocation3 [shape = 'f32[1,768]{1,0:T(1,128)}', space=vmem, size = 0xc00, scoped, tag = 'scratch operand']
  %s0 = inlined_call_operand.vmem [shape: f32[16,16], index: 0, kind: input, shape index: {}]
  %s1 = inlined_call_operand.vmem [shape: s32[16,1], index: 1, kind: input, shape index: {}]
  %s2 = inlined_call_operand.hbm [shape: f32[16,128], index: 2, kind: input, shape index: {}]
  %s3 = inlined_call_operand.hbm [shape: f32[16,128], index: 3, kind: input, shape index: {}]
  %s4 = inlined_call_operand.vmem [shape: f32[1,128], index: 4, kind: input, shape index: {}]
  %s5 = inlined_call_operand.hbm [shape: f32[16,1024], index: 5, kind: input, shape index: {}]
  %s6 = inlined_call_operand.hbm [shape: f32[16,1024], index: 6, kind: input, shape index: {}]
  %s7 = inlined_call_operand.vmem [shape: f32[1,1024], index: 7, kind: input, shape index: {}]
  %s8 = inlined_call_operand.hbm [shape: f32[16,768], index: 8, kind: input, shape index: {}]
  %s9 = inlined_call_operand.hbm [shape: f32[16,768], index: 9, kind: input, shape index: {}]
  %s10 = inlined_call_operand.vmem [shape: f32[1,768], index: 10, kind: input, shape index: {}]
  %s11 = inlined_call_operand.hbm [shape: f32[1], index: 11, kind: output, shape index: {}]
  %s12 = sld [smem:[#allocation0]]
  $region109: #{tpu_custom_call.1} parent=0
    _
  %s14 = ssub.s32 1, %s12
  %s15 = scalar_select 0, %s14, %s12
  $region1: #{tpu_custom_call.1} parent=0
    #allocation4 [shape = 'u8[8192]{0}', space=vmem, size = 0x2000, scoped, tag = 'input window, operand 2, single buffered']
    #allocation5 [shape = 's32[2]{0}', space=sflag, size = 0x8, scoped, tag = 'scoped memory for tpu_custom_call.1']
    #allocation6 [shape = 's32[2]{0}', space=sflag, size = 0x8, scoped, tag = 'scoped memory for tpu_custom_call.1']
    #allocation7 [shape = 'u8[8192]{0}', space=vmem, size = 0x2000, scoped, tag = 'input window, operand 3, single buffered']
    #allocation8 [shape = 's32[1]{0}', space=sflag, size = 0x4, scoped, tag = 'scoped memory for tpu_custom_call.1']
    #allocation9 [shape = 'u8[65536]{0}', space=vmem, size = 0x10000, scoped, tag = 'input window, operand 5']
    #allocation10 [shape = 'u8[65536]{0}', space=vmem, size = 0x10000, scoped, tag = 'input window, operand 6']
    #allocation11 [shape = 'u8[49152]{0}', space=vmem, size = 0xc000, scoped, tag = 'input window, operand 8']
    #allocation12 [shape = 'u8[49152]{0}', space=vmem, size = 0xc000, scoped, tag = 'input window, operand 9']
    #allocation13 [shape = 'u8[512]{0}', space=smem, size = 0x200, scoped, tag = 'output window, operand 0, single buffered']
    %16 = vsyncpa [#allocation5], 0
    %17 = vsyncpa [#allocation8], 0
    %18 = vsyncpa [#allocation6], 0
    loop: start=0, step=1, limit=4
    $region2: #{tpu_custom_call.1} parent=1 // loop_pre_header
      _
    $region3: #{tpu_custom_call.1} parent=1 // loop_header
      %s20 = sphi 0, %s24
      %p21 = scmp.ge.s32.totalorder %s20, 4
      %s28 = sphi 0, %s28
      %s30 = sphi 0, %s28
      %s31 = sphi 0, %s30
      %s45 = sphi 0, %s31
      %s49 = sphi 0, %s49
      %s51 = sphi 0, %s49
      %s52 = sphi 0, %s51
      %s66 = sphi 0, %s52
      %s70 = sphi 0, %s70
      %s72 = sphi 0, %s70
      %s73 = sphi 0, %s72
      %s87 = sphi 0, %s73
      %s91 = sphi 0, %s91
      %s93 = sphi 0, %s91
      %s94 = sphi 0, %s93
      %s108 = sphi 0, %s94
      %s112 = sphi 0, %s112
      %s114 = sphi 0, %s112
      %s115 = sphi 0, %s114
      %s129 = sphi 0, %s115
      %s135 = sphi 0, %s137
      %s138 = sphi 0, %s135
      %s139 = sphi 0, %s138
      %s155 = sphi 0, %s139
      %s161 = sphi 0, %s163
      %s164 = sphi 0, %s161
      %s165 = sphi 0, %s164
      %s181 = sphi 0, %s165
      %s185 = sphi 0, %s185
      %s187 = sphi 0, %s185
      %s188 = sphi 0, %s187
      %s202 = sphi 0, %s188
      %s208 = sphi 0, %s210
      %s211 = sphi 0, %s208
      %s212 = sphi 0, %s211
      %s228 = sphi 0, %s212
      %s234 = sphi 0, %s236
      %s237 = sphi 0, %s234
      %s238 = sphi 0, %s237
      %s254 = sphi 0, %s238
      %s258 = sphi 0, %s258
      %s260 = sphi 0, %s258
      %s261 = sphi 0, %s260
      %s275 = sphi 0, %s261
      %s279 = sphi 0, %s279
      %s281 = sphi 0, %s279
      %s282 = sphi 0, %s281
      %s296 = sphi 0, %s282
    $region4: #{tpu_custom_call.1} parent=1 // loop_header_branch
      %23 = sbr.rel (%p21) target = $region8
    $region5: #{tpu_custom_call.1} parent=1 // loop_body
      %s25 = ssub.s32 %s20, 1
      %s26 = ssub.s32 %s20, 2
      %s27 = sadd.s32 %s20, 1
      %s29 = sadd.s32 %s28, 1
      %p32 = scmp.eq.s32.totalorder %s20, 1
      %p33 = scmp.ne.s32.totalorder %s28, %s30
      %p34 = scmp.eq.s32.totalorder %s20, 0
      %p35 = por %p33, %p34
      %p36 = scmp.ne.s32.totalorder %s28, %s30
      %p37 = scmp.eq.s32.totalorder %s25, 1
      %p38 = por %p36, %p37
      %p39 = scmp.ne.s32.totalorder %s30, %s31
      %p40 = scmp.eq.s32.totalorder %s25, 0
      %p41 = por %p39, %p40
      %p42 = scmp.ne.s32.totalorder %s30, %s31
      %p43 = scmp.eq.s32.totalorder %s26, 1
      %p44 = por %p42, %p43
      %p46 = scmp.ne.s32.totalorder %s31, %s45
      %p47 = scmp.eq.s32.totalorder %s26, 0
      %p48 = por %p46, %p47
      %s50 = sadd.s32 %s49, 1
      %p53 = scmp.eq.s32.totalorder %s20, 1
      %p54 = scmp.ne.s32.totalorder %s49, %s51
      %p55 = scmp.eq.s32.totalorder %s20, 0
      %p56 = por %p54, %p55
      %p57 = scmp.ne.s32.totalorder %s49, %s51
      %p58 = scmp.eq.s32.totalorder %s25, 1
      %p59 = por %p57, %p58
      %p60 = scmp.ne.s32.totalorder %s51, %s52
      %p61 = scmp.eq.s32.totalorder %s25, 0
      %p62 = por %p60, %p61
      %p63 = scmp.ne.s32.totalorder %s51, %s52
      %p64 = scmp.eq.s32.totalorder %s26, 1
      %p65 = por %p63, %p64
      %p67 = scmp.ne.s32.totalorder %s52, %s66
      %p68 = scmp.eq.s32.totalorder %s26, 0
      %p69 = por %p67, %p68
      %s71 = sadd.s32 %s70, 1
      %p74 = scmp.eq.s32.totalorder %s20, 1
      %p75 = scmp.ne.s32.totalorder %s70, %s72
      %p76 = scmp.eq.s32.totalorder %s20, 0
      %p77 = por %p75, %p76
      %p78 = scmp.ne.s32.totalorder %s70, %s72
      %p79 = scmp.eq.s32.totalorder %s25, 1
      %p80 = por %p78, %p79
      %p81 = scmp.ne.s32.totalorder %s72, %s73
      %p82 = scmp.eq.s32.totalorder %s25, 0
      %p83 = por %p81, %p82
      %p84 = scmp.ne.s32.totalorder %s72, %s73
      %p85 = scmp.eq.s32.totalorder %s26, 1
      %p86 = por %p84, %p85
      %p88 = scmp.ne.s32.totalorder %s73, %s87
      %p89 = scmp.eq.s32.totalorder %s26, 0
      %p90 = por %p88, %p89
      %s92 = sadd.s32 %s91, 1
      %p95 = scmp.eq.s32.totalorder %s20, 1
      %p96 = scmp.ne.s32.totalorder %s91, %s93
      %p97 = scmp.eq.s32.totalorder %s20, 0
      %p98 = por %p96, %p97
      %p99 = scmp.ne.s32.totalorder %s91, %s93
      %p100 = scmp.eq.s32.totalorder %s25, 1
      %p101 = por %p99, %p100
      %p102 = scmp.ne.s32.totalorder %s93, %s94
      %p103 = scmp.eq.s32.totalorder %s25, 0
      %p104 = por %p102, %p103
      %p105 = scmp.ne.s32.totalorder %s93, %s94
      %p106 = scmp.eq.s32.totalorder %s26, 1
      %p107 = por %p105, %p106
      %p109 = scmp.ne.s32.totalorder %s94, %s108
      %p110 = scmp.eq.s32.totalorder %s26, 0
      %p111 = por %p109, %p110
      %s113 = sadd.s32 %s112, 1
      %p116 = scmp.eq.s32.totalorder %s20, 1
      %p117 = scmp.ne.s32.totalorder %s112, %s114
      %p118 = scmp.eq.s32.totalorder %s20, 0
      %p119 = por %p117, %p118
      %p120 = scmp.ne.s32.totalorder %s112, %s114
      %p121 = scmp.eq.s32.totalorder %s25, 1
      %p122 = por %p120, %p121
      %p123 = scmp.ne.s32.totalorder %s114, %s115
      %p124 = scmp.eq.s32.totalorder %s25, 0
      %p125 = por %p123, %p124
      %p126 = scmp.ne.s32.totalorder %s114, %s115
      %p127 = scmp.eq.s32.totalorder %s26, 1
      %p128 = por %p126, %p127
      %p130 = scmp.ne.s32.totalorder %s115, %s129
      %p131 = scmp.eq.s32.totalorder %s26, 0
      %p132 = por %p130, %p131
      %s133 = ssub.s32 %s20, %s27
      %p134 = scmp.eq.s32.totalorder %s133, 0
      %s136 = sadd.s32 %s135, 1
      %s137 = scalar_select %p134, %s135, %s136
      %p140 = pneg %p134
      %p141 = scmp.eq.s32.totalorder %s20, 1
      %p142 = por %p140, %p141
      %p143 = scmp.ne.s32.totalorder %s135, %s138
      %p144 = scmp.eq.s32.totalorder %s20, 0
      %p145 = por %p143, %p144
      %p146 = scmp.ne.s32.totalorder %s135, %s138
      %p147 = scmp.eq.s32.totalorder %s25, 1
      %p148 = por %p146, %p147
      %p149 = scmp.ne.s32.totalorder %s138, %s139
      %p150 = scmp.eq.s32.totalorder %s25, 0
      %p151 = por %p149, %p150
      %p152 = scmp.ne.s32.totalorder %s138, %s139
      %p153 = scmp.eq.s32.totalorder %s26, 1
      %p154 = por %p152, %p153
      %p156 = scmp.ne.s32.totalorder %s139, %s155
      %p157 = scmp.eq.s32.totalorder %s26, 0
      %p158 = por %p156, %p157
      %s159 = ssub.s32 %s20, %s27
      %p160 = scmp.eq.s32.totalorder %s159, 0
      %s162 = sadd.s32 %s161, 1
      %s163 = scalar_select %p160, %s161, %s162
      %p166 = pneg %p160
      %p167 = scmp.eq.s32.totalorder %s20, 1
      %p168 = por %p166, %p167
      %p169 = scmp.ne.s32.totalorder %s161, %s164
      %p170 = scmp.eq.s32.totalorder %s20, 0
      %p171 = por %p169, %p170
      %p172 = scmp.ne.s32.totalorder %s161, %s164
      %p173 = scmp.eq.s32.totalorder %s25, 1
      %p174 = por %p172, %p173
      %p175 = scmp.ne.s32.totalorder %s164, %s165
      %p176 = scmp.eq.s32.totalorder %s25, 0
      %p177 = por %p175, %p176
      %p178 = scmp.ne.s32.totalorder %s164, %s165
      %p179 = scmp.eq.s32.totalorder %s26, 1
      %p180 = por %p178, %p179
      %p182 = scmp.ne.s32.totalorder %s165, %s181
      %p183 = scmp.eq.s32.totalorder %s26, 0
      %p184 = por %p182, %p183
      %s186 = sadd.s32 %s185, 1
      %p189 = scmp.eq.s32.totalorder %s20, 1
      %p190 = scmp.ne.s32.totalorder %s185, %s187
      %p191 = scmp.eq.s32.totalorder %s20, 0
      %p192 = por %p190, %p191
      %p193 = scmp.ne.s32.totalorder %s185, %s187
      %p194 = scmp.eq.s32.totalorder %s25, 1
      %p195 = por %p193, %p194
      %p196 = scmp.ne.s32.totalorder %s187, %s188
      %p197 = scmp.eq.s32.totalorder %s25, 0
      %p198 = por %p196, %p197
      %p199 = scmp.ne.s32.totalorder %s187, %s188
      %p200 = scmp.eq.s32.totalorder %s26, 1
      %p201 = por %p199, %p200
      %p203 = scmp.ne.s32.totalorder %s188, %s202
      %p204 = scmp.eq.s32.totalorder %s26, 0
      %p205 = por %p203, %p204
      %s206 = ssub.s32 %s20, %s27
      %p207 = scmp.eq.s32.totalorder %s206, 0
      %s209 = sadd.s32 %s208, 1
      %s210 = scalar_select %p207, %s208, %s209
      %p213 = pneg %p207
      %p214 = scmp.eq.s32.totalorder %s20, 1
      %p215 = por %p213, %p214
      %p216 = scmp.ne.s32.totalorder %s208, %s211
      %p217 = scmp.eq.s32.totalorder %s20, 0
      %p218 = por %p216, %p217
      %p219 = scmp.ne.s32.totalorder %s208, %s211
      %p220 = scmp.eq.s32.totalorder %s25, 1
      %p221 = por %p219, %p220
      %p222 = scmp.ne.s32.totalorder %s211, %s212
      %p223 = scmp.eq.s32.totalorder %s25, 0
      %p224 = por %p222, %p223
      %p225 = scmp.ne.s32.totalorder %s211, %s212
      %p226 = scmp.eq.s32.totalorder %s26, 1
      %p227 = por %p225, %p226
      %p229 = scmp.ne.s32.totalorder %s212, %s228
      %p230 = scmp.eq.s32.totalorder %s26, 0
      %p231 = por %p229, %p230
      %s232 = ssub.s32 %s20, %s27
      %p233 = scmp.eq.s32.totalorder %s232, 0
      %s235 = sadd.s32 %s234, 1
      %s236 = scalar_select %p233, %s234, %s235
      %p239 = pneg %p233
      %p240 = scmp.eq.s32.totalorder %s20, 1
      %p241 = por %p239, %p240
      %p242 = scmp.ne.s32.totalorder %s234, %s237
      %p243 = scmp.eq.s32.totalorder %s20, 0
      %p244 = por %p242, %p243
      %p245 = scmp.ne.s32.totalorder %s234, %s237
      %p246 = scmp.eq.s32.totalorder %s25, 1
      %p247 = por %p245, %p246
      %p248 = scmp.ne.s32.totalorder %s237, %s238
      %p249 = scmp.eq.s32.totalorder %s25, 0
      %p250 = por %p248, %p249
      %p251 = scmp.ne.s32.totalorder %s237, %s238
      %p252 = scmp.eq.s32.totalorder %s26, 1
      %p253 = por %p251, %p252
      %p255 = scmp.ne.s32.totalorder %s238, %s254
      %p256 = scmp.eq.s32.totalorder %s26, 0
      %p257 = por %p255, %p256
      %s259 = sadd.s32 %s258, 1
      %p262 = scmp.eq.s32.totalorder %s20, 1
      %p263 = scmp.ne.s32.totalorder %s258, %s260
      %p264 = scmp.eq.s32.totalorder %s20, 0
      %p265 = por %p263, %p264
      %p266 = scmp.ne.s32.totalorder %s258, %s260
      %p267 = scmp.eq.s32.totalorder %s25, 1
      %p268 = por %p266, %p267
      %p269 = scmp.ne.s32.totalorder %s260, %s261
      %p270 = scmp.eq.s32.totalorder %s25, 0
      %p271 = por %p269, %p270
      %p272 = scmp.ne.s32.totalorder %s260, %s261
      %p273 = scmp.eq.s32.totalorder %s26, 1
      %p274 = por %p272, %p273
      %p276 = scmp.ne.s32.totalorder %s261, %s275
      %p277 = scmp.eq.s32.totalorder %s26, 0
      %p278 = por %p276, %p277
      %s280 = sadd.s32 %s279, 1
      %p283 = scmp.eq.s32.totalorder %s20, 1
      %p284 = scmp.ne.s32.totalorder %s279, %s281
      %p285 = scmp.eq.s32.totalorder %s20, 0
      %p286 = por %p284, %p285
      %p287 = scmp.ne.s32.totalorder %s279, %s281
      %p288 = scmp.eq.s32.totalorder %s25, 1
      %p289 = por %p287, %p288
      %p290 = scmp.ne.s32.totalorder %s281, %s282
      %p291 = scmp.eq.s32.totalorder %s25, 0
      %p292 = por %p290, %p291
      %p293 = scmp.ne.s32.totalorder %s281, %s282
      %p294 = scmp.eq.s32.totalorder %s26, 1
      %p295 = por %p293, %p294
      %p297 = scmp.ne.s32.totalorder %s282, %s296
      %p298 = scmp.eq.s32.totalorder %s26, 0
      %p299 = por %p297, %p298
      %p300 = scmp.le.s32.totalorder 1, %s20
      %p301 = scmp.lt.s32.totalorder %s20, 3
      %p302 = pnand %p300, %p301
      %p303 = pneg %p302
      // Predicated region
      $region9: #{tpu_custom_call.1} parent=5 // pred_check
        _
      $region10: #{tpu_custom_call.1} parent=5 // pred_check_branch
        %305 = sbr.rel (%p302) target = $region12
      $region11: #{tpu_custom_call.1} parent=5 // pred_region
        %s306 = ssub.s32 %s20, 1
        // Predicated region
        $region13: #{tpu_custom_call.1} parent=11 // pred_check
          %p307 = pneg %p41
        $region14: #{tpu_custom_call.1} parent=11 // pred_check_branch
          %309 = sbr.rel (%p307) target = $region16
        $region15: #{tpu_custom_call.1} parent=11 // pred_region
          _
        $region16: #{tpu_custom_call.1} parent=11 // pred_fallthru
          _
        // Predicated region
        $region17: #{tpu_custom_call.1} parent=11 // pred_check
          %p310 = pneg %p62
        $region18: #{tpu_custom_call.1} parent=11 // pred_check_branch
          %312 = sbr.rel (%p310) target = $region20
        $region19: #{tpu_custom_call.1} parent=11 // pred_region
          _
        $region20: #{tpu_custom_call.1} parent=11 // pred_fallthru
          _
        // Predicated region
        $region21: #{tpu_custom_call.1} parent=11 // pred_check
          %p313 = pneg %p83
        $region22: #{tpu_custom_call.1} parent=11 // pred_check_branch
          %315 = sbr.rel (%p313) target = $region24
        $region23: #{tpu_custom_call.1} parent=11 // pred_region
          %s317 = ssub.s32 256, 256
          %318 = vsyncadd [#allocation5], %s317
          %s319 = sshll.u32 [#allocation4], 4
          %s320 = int_to_ptr.vmem [resolvable:$true] %s319
          %325 = dma.hbm_to_vmem [thread:$0]  %s2, 256, %s320, [#allocation5], 128, 128, 8
        $region24: #{tpu_custom_call.1} parent=11 // pred_fallthru
          _
        // Predicated region
        $region25: #{tpu_custom_call.1} parent=11 // pred_check
          %p326 = pneg %p104
        $region26: #{tpu_custom_call.1} parent=11 // pred_check_branch
          %328 = sbr.rel (%p326) target = $region28
        $region27: #{tpu_custom_call.1} parent=11 // pred_region
          %s330 = ssub.s32 256, 256
          %331 = vsyncadd [#allocation8], %s330
          %s332 = sshll.u32 [#allocation7], 4
          %s333 = int_to_ptr.vmem [resolvable:$true] %s332
          %338 = dma.hbm_to_vmem [thread:$0]  %s3, 256, %s333, [#allocation8], 128, 128, 8
        $region28: #{tpu_custom_call.1} parent=11 // pred_fallthru
          _
        // Predicated region
        $region29: #{tpu_custom_call.1} parent=11 // pred_check
          %p339 = pneg %p125
        $region30: #{tpu_custom_call.1} parent=11 // pred_check_branch
          %341 = sbr.rel (%p339) target = $region32
        $region31: #{tpu_custom_call.1} parent=11 // pred_region
          _
        $region32: #{tpu_custom_call.1} parent=11 // pred_fallthru
          _
        // Predicated region
        $region33: #{tpu_custom_call.1} parent=11 // pred_check
          %p342 = pneg %p198
        $region34: #{tpu_custom_call.1} parent=11 // pred_check_branch
          %344 = sbr.rel (%p342) target = $region36
        $region35: #{tpu_custom_call.1} parent=11 // pred_region
          _
        $region36: #{tpu_custom_call.1} parent=11 // pred_fallthru
          _
        // Predicated region
        $region37: #{tpu_custom_call.1} parent=11 // pred_check
          %p345 = pneg %p271
        $region38: #{tpu_custom_call.1} parent=11 // pred_check_branch
          %347 = sbr.rel (%p345) target = $region40
        $region39: #{tpu_custom_call.1} parent=11 // pred_region
          _
        $region40: #{tpu_custom_call.1} parent=11 // pred_fallthru
          _
      $region12: #{tpu_custom_call.1} parent=5 // pred_fallthru
        _
      %p348 = scmp.lt.s32.totalorder %s20, 2
      // Predicated region
      $region41: #{tpu_custom_call.1} parent=5 // pred_check
        %p349 = pneg %p348
      $region42: #{tpu_custom_call.1} parent=5 // pred_check_branch
        %351 = sbr.rel (%p349) target = $region44
      $region43: #{tpu_custom_call.1} parent=5 // pred_region
        // Predicated region
        $region45: #{tpu_custom_call.1} parent=43 // pred_check
          %p352 = pneg %p145
        $region46: #{tpu_custom_call.1} parent=43 // pred_check_branch
          %354 = sbr.rel (%p352) target = $region48
        $region47: #{tpu_custom_call.1} parent=43 // pred_region
          %s355 = sand.u32 %s20, 1
          %s356 = scalar_lea.sflag [#allocation5], %s355
          %s357 = sand.u32 %s135, 1
          %s358 = smul.addr %s357, 64
          %s359 = scalar_lea.vmem [#allocation9], %s358
          %s361 = ssub.s32 1024, 1024
          %362 = vsyncadd %s356, %s361
          %s363 = smul.addr %s20, 8
          %s364 = smul.addr %s363, 128
          %s365 = scalar_lea.hbm %s5, %s364
          %s367 = sshll.u32 %s359, 4
          %s368 = int_to_ptr.vmem [resolvable:$true] %s367
          %370 = dma.hbm_to_vmem [thread:$0]  %s365, 1024, %s368, %s356
        $region48: #{tpu_custom_call.1} parent=43 // pred_fallthru
          _
        // Predicated region
        $region49: #{tpu_custom_call.1} parent=43 // pred_check
          %p371 = pneg %p171
        $region50: #{tpu_custom_call.1} parent=43 // pred_check_branch
          %373 = sbr.rel (%p371) target = $region52
        $region51: #{tpu_custom_call.1} parent=43 // pred_region
          %s374 = sand.u32 %s20, 1
          %s375 = scalar_lea.sflag [#allocation5], %s374
          %s376 = sand.u32 %s161, 1
          %s377 = smul.addr %s376, 64
          %s378 = scalar_lea.vmem [#allocation10], %s377
          %s380 = ssub.s32 1024, 1024
          %381 = vsyncadd %s375, %s380
          %s382 = smul.addr %s20, 8
          %s383 = smul.addr %s382, 128
          %s384 = scalar_lea.hbm %s6, %s383
          %s386 = sshll.u32 %s378, 4
          %s387 = int_to_ptr.vmem [resolvable:$true] %s386
          %389 = dma.hbm_to_vmem [thread:$0]  %s384, 1024, %s387, %s375
        $region52: #{tpu_custom_call.1} parent=43 // pred_fallthru
          _
        // Predicated region
        $region53: #{tpu_custom_call.1} parent=43 // pred_check
          %p390 = pneg %p218
        $region54: #{tpu_custom_call.1} parent=43 // pred_check_branch
          %392 = sbr.rel (%p390) target = $region56
        $region55: #{tpu_custom_call.1} parent=43 // pred_region
          %s393 = sand.u32 %s20, 1
          %s394 = scalar_lea.sflag [#allocation5], %s393
          %s395 = sand.u32 %s208, 1
          %s396 = smul.addr %s395, 48
          %s397 = scalar_lea.vmem [#allocation11], %s396
          %s399 = ssub.s32 768, 768
          %400 = vsyncadd %s394, %s399
          %s401 = smul.addr %s20, 6
          %s402 = smul.addr %s401, 128
          %s403 = scalar_lea.hbm %s8, %s402
          %s405 = sshll.u32 %s397, 4
          %s406 = int_to_ptr.vmem [resolvable:$true] %s405
          %408 = dma.hbm_to_vmem [thread:$0]  %s403, 768, %s406, %s394
        $region56: #{tpu_custom_call.1} parent=43 // pred_fallthru
          _
        // Predicated region
        $region57: #{tpu_custom_call.1} parent=43 // pred_check
          %p409 = pneg %p244
        $region58: #{tpu_custom_call.1} parent=43 // pred_check_branch
          %411 = sbr.rel (%p409) target = $region60
        $region59: #{tpu_custom_call.1} parent=43 // pred_region
          %s412 = sand.u32 %s20, 1
          %s413 = scalar_lea.sflag [#allocation5], %s412
          %s414 = sand.u32 %s234, 1
          %s415 = smul.addr %s414, 48
          %s416 = scalar_lea.vmem [#allocation12], %s415
          %s418 = ssub.s32 768, 768
          %419 = vsyncadd %s413, %s418
          %s420 = smul.addr %s20, 6
          %s421 = smul.addr %s420, 128
          %s422 = scalar_lea.hbm %s9, %s421
          %s424 = sshll.u32 %s416, 4
          %s425 = int_to_ptr.vmem [resolvable:$true] %s424
          %427 = dma.hbm_to_vmem [thread:$0]  %s422, 768, %s425, %s413
        $region60: #{tpu_custom_call.1} parent=43 // pred_fallthru
          _
      $region44: #{tpu_custom_call.1} parent=5 // pred_fallthru
        _
      %p428 = scmp.le.s32.totalorder 1, %s20
      %p429 = scmp.lt.s32.totalorder %s20, 3
      %p430 = pnand %p428, %p429
      %p431 = pneg %p430
      // Predicated region
      $region61: #{tpu_custom_call.1} parent=5 // pred_check
        _
      $region62: #{tpu_custom_call.1} parent=5 // pred_check_branch
        %433 = sbr.rel (%p430) target = $region64
      $region63: #{tpu_custom_call.1} parent=5 // pred_region
        %s434 = ssub.s32 %s20, 1
        // Predicated region
        $region65: #{tpu_custom_call.1} parent=63 // pred_check
          %p435 = pneg %p83
        $region66: #{tpu_custom_call.1} parent=63 // pred_check_branch
          %437 = sbr.rel (%p435) target = $region68
        $region67: #{tpu_custom_call.1} parent=63 // pred_region
          %438 = dma.done [#allocation5], 256
        $region68: #{tpu_custom_call.1} parent=63 // pred_fallthru
          _
        // Predicated region
        $region69: #{tpu_custom_call.1} parent=63 // pred_check
          %p439 = pneg %p104
        $region70: #{tpu_custom_call.1} parent=63 // pred_check_branch
          %441 = sbr.rel (%p439) target = $region72
        $region71: #{tpu_custom_call.1} parent=63 // pred_region
          %442 = dma.done [#allocation8], 256
        $region72: #{tpu_custom_call.1} parent=63 // pred_fallthru
          _
        %s443 = sand.u32 %s25, 1
        %s444 = scalar_lea.sflag [#allocation5], %s443
        %s445 = sand.u32 %s138, 1
        %s446 = smul.addr %s445, 64
        %s447 = scalar_lea.vmem [#allocation9], %s446
        // Predicated region
        $region73: #{tpu_custom_call.1} parent=63 // pred_check
          %p448 = pneg %p151
        $region74: #{tpu_custom_call.1} parent=63 // pred_check_branch
          %450 = sbr.rel (%p448) target = $region76
        $region75: #{tpu_custom_call.1} parent=63 // pred_region
          %451 = dma.done %s444, 1024
        $region76: #{tpu_custom_call.1} parent=63 // pred_fallthru
          _
        %s452 = sand.u32 %s25, 1
        %s453 = scalar_lea.sflag [#allocation5], %s452
        %s454 = sand.u32 %s164, 1
        %s455 = smul.addr %s454, 64
        %s456 = scalar_lea.vmem [#allocation10], %s455
        // Predicated region
        $region77: #{tpu_custom_call.1} parent=63 // pred_check
          %p457 = pneg %p177
        $region78: #{tpu_custom_call.1} parent=63 // pred_check_branch
          %459 = sbr.rel (%p457) target = $region80
        $region79: #{tpu_custom_call.1} parent=63 // pred_region
          %460 = dma.done %s453, 1024
        $region80: #{tpu_custom_call.1} parent=63 // pred_fallthru
          _
        %s461 = sand.u32 %s25, 1
        %s462 = scalar_lea.sflag [#allocation5], %s461
        %s463 = sand.u32 %s211, 1
        %s464 = smul.addr %s463, 48
        %s465 = scalar_lea.vmem [#allocation11], %s464
        // Predicated region
        $region81: #{tpu_custom_call.1} parent=63 // pred_check
          %p466 = pneg %p224
        $region82: #{tpu_custom_call.1} parent=63 // pred_check_branch
          %468 = sbr.rel (%p466) target = $region84
        $region83: #{tpu_custom_call.1} parent=63 // pred_region
          %469 = dma.done %s462, 768
        $region84: #{tpu_custom_call.1} parent=63 // pred_fallthru
          _
        %s470 = sand.u32 %s25, 1
        %s471 = scalar_lea.sflag [#allocation5], %s470
        %s472 = sand.u32 %s237, 1
        %s473 = smul.addr %s472, 48
        %s474 = scalar_lea.vmem [#allocation12], %s473
        // Predicated region
        $region85: #{tpu_custom_call.1} parent=63 // pred_check
          %p475 = pneg %p250
        $region86: #{tpu_custom_call.1} parent=63 // pred_check_branch
          %477 = sbr.rel (%p475) target = $region88
        $region87: #{tpu_custom_call.1} parent=63 // pred_region
          %478 = dma.done %s471, 768
        $region88: #{tpu_custom_call.1} parent=63 // pred_fallthru
          _
        %p479 = pneg %p41
        %p480 = pneg %p38
        %p481 = pneg %p62
        %p482 = pneg %p59
        %p483 = pneg %p83
        %p484 = pneg %p80
        %p485 = pneg %p104
        %p486 = pneg %p101
        %p487 = pneg %p125
        %p488 = pneg %p122
        %s489 = sand.u32 %s25, 1
        %s490 = scalar_lea.sflag [#allocation5], %s489
        %s491 = sand.u32 %s138, 1
        %s492 = smul.addr %s491, 64
        %s493 = scalar_lea.vmem [#allocation9], %s492
        %p494 = pneg %p151
        %p495 = pneg %p148
        %s496 = sand.u32 %s25, 1
        %s497 = scalar_lea.sflag [#allocation5], %s496
        %s498 = sand.u32 %s164, 1
        %s499 = smul.addr %s498, 64
        %s500 = scalar_lea.vmem [#allocation10], %s499
        %p501 = pneg %p177
        %p502 = pneg %p174
        %p503 = pneg %p198
        %p504 = pneg %p195
        %s505 = sand.u32 %s25, 1
        %s506 = scalar_lea.sflag [#allocation5], %s505
        %s507 = sand.u32 %s211, 1
        %s508 = smul.addr %s507, 48
        %s509 = scalar_lea.vmem [#allocation11], %s508
        %p510 = pneg %p224
        %p511 = pneg %p221
        %s512 = sand.u32 %s25, 1
        %s513 = scalar_lea.sflag [#allocation5], %s512
        %s514 = sand.u32 %s237, 1
        %s515 = smul.addr %s514, 48
        %s516 = scalar_lea.vmem [#allocation12], %s515
        %p517 = pneg %p250
        %p518 = pneg %p247
        %p519 = pneg %p271
        %p520 = pneg %p268
        %p521 = pneg %p292
        %p522 = pneg %p289
        %p523 = scmp.eq.s32.totalorder %s25, 0
        // Predicated region
        $region89: #{tpu_custom_call.1} parent=63 // pred_check
          %p524 = pneg %p523
        $region90: #{tpu_custom_call.1} parent=63 // pred_check_branch
          %526 = sbr.rel (%p524) target = $region92
        $region91: #{tpu_custom_call.1} parent=63 // pred_region
          %527 = vst [vmem:[#allocation2] sm:$0xff] 0.0
          %v528 = vlaneseq
          %vm529 = vcmp.ge.s32.totalorder %v528, 0
          %vm530 = vcmp.lt.s32.totalorder %v528, 768
          %vm531 = vmand %vm529, %vm530
          %532 = vst.msk [vmem:[#allocation3] sm:$0x3f] %vm531, 0.0
        $region92: #{tpu_custom_call.1} parent=63 // pred_fallthru
          _
        %v533 = vld [vmem:[%s447] sm:$0xff]
        %v534 = vld [vmem:[%s447 + $0x8] sm:$0xff]
        %v535 = vld [vmem:[%s447 + $0x10] sm:$0xff]
        %v536 = vld [vmem:[%s447 + $0x18] sm:$0xff]
        %v537 = vld [vmem:[%s447 + $0x20] sm:$0xff]
        %v538 = vld [vmem:[%s447 + $0x28] sm:$0xff]
        %v539 = vld [vmem:[%s447 + $0x30] sm:$0xff]
        %v540 = vld [vmem:[%s447 + $0x38] sm:$0xff]
        %v541 = vld [vmem:[%s456] sm:$0xff]
        %v542 = vld [vmem:[%s456 + $0x8] sm:$0xff]
        %v543 = vld [vmem:[%s456 + $0x10] sm:$0xff]
        %v544 = vld [vmem:[%s456 + $0x18] sm:$0xff]
        %v545 = vld [vmem:[%s456 + $0x20] sm:$0xff]
        %v546 = vld [vmem:[%s456 + $0x28] sm:$0xff]
        %v547 = vld [vmem:[%s456 + $0x30] sm:$0xff]
        %v548 = vld [vmem:[%s456 + $0x38] sm:$0xff]
        %v549 = vsub.f32 %v533, %v541
        %v550 = vsub.f32 %v534, %v542
        %v551 = vsub.f32 %v535, %v543
        %v552 = vsub.f32 %v536, %v544
        %v553 = vsub.f32 %v537, %v545
        %v554 = vsub.f32 %v538, %v546
        %v555 = vsub.f32 %v539, %v547
        %v556 = vsub.f32 %v540, %v548
        %v557 = vld [vmem:[%s7] sm:$0xff]
        %v559 = vlaneseq
        %v560 = vshrl.u32 %v559, 7
        %v561 = vsub.s32 0, %v560
        %v562 = vrot.slane %v557, %v561
        %v563 = vlaneseq
        %v564 = vshrl.u32 %v563, 7
        %v565 = vsub.s32 1, %v564
        %v566 = vrot.slane %v557, %v565
        %v567 = vlaneseq
        %v568 = vshrl.u32 %v567, 7
        %v569 = vsub.s32 2, %v568
        %v570 = vrot.slane %v557, %v569
        %v571 = vlaneseq
        %v572 = vshrl.u32 %v571, 7
        %v573 = vsub.s32 3, %v572
        %v574 = vrot.slane %v557, %v573
        %v575 = vlaneseq
        %v576 = vshrl.u32 %v575, 7
        %v577 = vsub.s32 4, %v576
        %v578 = vrot.slane %v557, %v577
        %v579 = vlaneseq
        %v580 = vshrl.u32 %v579, 7
        %v581 = vsub.s32 5, %v580
        %v582 = vrot.slane %v557, %v581
        %v583 = vlaneseq
        %v584 = vshrl.u32 %v583, 7
        %v585 = vsub.s32 6, %v584
        %v586 = vrot.slane %v557, %v585
        %v587 = vlaneseq
        %v588 = vshrl.u32 %v587, 7
        %v589 = vsub.s32 7, %v588
        %v590 = vrot.slane %v557, %v589
        %v599 = vmul.f32 %v549, %v562
        %v600 = vmul.f32 %v550, %v566
        %v601 = vmul.f32 %v551, %v570
        %v602 = vmul.f32 %v552, %v574
        %v603 = vmul.f32 %v553, %v578
        %v604 = vmul.f32 %v554, %v582
        %v605 = vmul.f32 %v555, %v586
        %v606 = vmul.f32 %v556, %v590
        %v607 = vmul.f32 %v599, %v599
        %v608 = vmul.f32 %v600, %v600
        %v609 = vmul.f32 %v601, %v601
        %v610 = vmul.f32 %v602, %v602
        %v611 = vmul.f32 %v603, %v603
        %v612 = vmul.f32 %v604, %v604
        %v613 = vmul.f32 %v605, %v605
        %v614 = vmul.f32 %v606, %v606
        %v615 = vld [vmem:[#allocation2] sm:$0xff]
        %v616 = vrot.slane %v607, 4
        %v617 = vadd.f32 %v607, %v616
        %v618 = vrot.slane %v617, 2
        %v619 = vadd.f32 %v617, %v618
        %v620 = vrot.slane %v619, 1
        %v621 = vadd.f32 %v619, %v620
        %v622 = vrot.slane %v608, 4
        %v623 = vadd.f32 %v608, %v622
        %v624 = vrot.slane %v623, 2
        %v625 = vadd.f32 %v623, %v624
        %v626 = vrot.slane %v625, 1
        %v627 = vadd.f32 %v625, %v626
        %v628 = vrot.slane %v609, 4
        %v629 = vadd.f32 %v609, %v628
        %v630 = vrot.slane %v629, 2
        %v631 = vadd.f32 %v629, %v630
        %v632 = vrot.slane %v631, 1
        %v633 = vadd.f32 %v631, %v632
        %v634 = vrot.slane %v610, 4
        %v635 = vadd.f32 %v610, %v634
        %v636 = vrot.slane %v635, 2
        %v637 = vadd.f32 %v635, %v636
        %v638 = vrot.slane %v637, 1
        %v639 = vadd.f32 %v637, %v638
        %v640 = vrot.slane %v611, 4
        %v641 = vadd.f32 %v611, %v640
        %v642 = vrot.slane %v641, 2
        %v643 = vadd.f32 %v641, %v642
        %v644 = vrot.slane %v643, 1
        %v645 = vadd.f32 %v643, %v644
        %v646 = vrot.slane %v612, 4
        %v647 = vadd.f32 %v612, %v646
        %v648 = vrot.slane %v647, 2
        %v649 = vadd.f32 %v647, %v648
        %v650 = vrot.slane %v649, 1
        %v651 = vadd.f32 %v649, %v650
        %v652 = vrot.slane %v613, 4
        %v653 = vadd.f32 %v613, %v652
        %v654 = vrot.slane %v653, 2
        %v655 = vadd.f32 %v653, %v654
        %v656 = vrot.slane %v655, 1
        %v657 = vadd.f32 %v655, %v656
        %v658 = vrot.slane %v614, 4
        %v659 = vadd.f32 %v614, %v658
        %v660 = vrot.slane %v659, 2
        %v661 = vadd.f32 %v659, %v660
        %v662 = vrot.slane %v661, 1
        %v663 = vadd.f32 %v661, %v662
        %v672 = vcombine.low %v621, %v627
        %v673 = vcombine.low %v633, %v639
        %v674 = vcombine.low %v645, %v651
        %v675 = vcombine.low %v657, %v663
        %v677 = vunpack.c.l.s4 1966171168
        %v678 = vunpack.c.0.s8 %v677
        %v679 = vlaneseq
        %v680 = vshrl.u32 %v679, 7
        %v681 = vsub.s32 %v678, %v680
        %v682 = vrot.slane %v672, %v681
        %v684 = vunpack.c.l.s4 1966171168
        %v685 = vunpack.c.0.s8 %v684
        %v686 = vlaneseq
        %v687 = vshrl.u32 %v686, 7
        %v688 = vsub.s32 %v685, %v687
        %v689 = vrot.slane %v673, %v688
        %v691 = vunpack.c.l.s4 1966171168
        %v692 = vunpack.c.0.s8 %v691
        %v693 = vlaneseq
        %v694 = vshrl.u32 %v693, 7
        %v695 = vsub.s32 %v692, %v694
        %v696 = vrot.slane %v674, %v695
        %v698 = vunpack.c.l.s4 1966171168
        %v699 = vunpack.c.0.s8 %v698
        %v700 = vlaneseq
        %v701 = vshrl.u32 %v700, 7
        %v702 = vsub.s32 %v699, %v701
        %v703 = vrot.slane %v675, %v702
        %v704 = vcombine.low %v682, %v689
        %v705 = vcombine.low %v696, %v703
        %v707 = vunpack.c.l.s4 1966171168
        %v708 = vunpack.c.0.s8 %v707
        %v709 = vlaneseq
        %v710 = vshrl.u32 %v709, 7
        %v711 = vsub.s32 %v708, %v710
        %v712 = vrot.slane %v704, %v711
        %v714 = vunpack.c.l.s4 1966171168
        %v715 = vunpack.c.0.s8 %v714
        %v716 = vlaneseq
        %v717 = vshrl.u32 %v716, 7
        %v718 = vsub.s32 %v715, %v717
        %v719 = vrot.slane %v705, %v718
        %v720 = vcombine.low %v712, %v719
        %v722 = vadd.f32 %v615, %v720
        %723 = vst [vmem:[#allocation2] sm:$0xff] %v722
        %v724 = vld [vmem:[%s465] sm:$0xff]
        %v725 = vld [vmem:[%s465 + $0x8] sm:$0xff]
        %v726 = vld [vmem:[%s465 + $0x10] sm:$0xff]
        %v727 = vld [vmem:[%s465 + $0x18] sm:$0xff]
        %v728 = vld [vmem:[%s465 + $0x20] sm:$0xff]
        %v729 = vld [vmem:[%s465 + $0x28] sm:$0xff]
        %v730 = vld [vmem:[%s474] sm:$0xff]
        %v731 = vld [vmem:[%s474 + $0x8] sm:$0xff]
        %v732 = vld [vmem:[%s474 + $0x10] sm:$0xff]
        %v733 = vld [vmem:[%s474 + $0x18] sm:$0xff]
        %v734 = vld [vmem:[%s474 + $0x20] sm:$0xff]
        %v735 = vld [vmem:[%s474 + $0x28] sm:$0xff]
        %v736 = vsub.f32 %v724, %v730
        %v737 = vsub.f32 %v725, %v731
        %v738 = vsub.f32 %v726, %v732
        %v739 = vsub.f32 %v727, %v733
        %v740 = vsub.f32 %v728, %v734
        %v741 = vsub.f32 %v729, %v735
        %v742 = vld [vmem:[%s10] sm:$0x3f]
        %v744 = vlaneseq
        %v745 = vshrl.u32 %v744, 7
        %v746 = vsub.s32 0, %v745
        %v747 = vrot.slane %v742, %v746
        %v748 = vlaneseq
        %v749 = vshrl.u32 %v748, 7
        %v750 = vsub.s32 1, %v749
        %v751 = vrot.slane %v742, %v750
        %v752 = vlaneseq
        %v753 = vshrl.u32 %v752, 7
        %v754 = vsub.s32 2, %v753
        %v755 = vrot.slane %v742, %v754
        %v756 = vlaneseq
        %v757 = vshrl.u32 %v756, 7
        %v758 = vsub.s32 3, %v757
        %v759 = vrot.slane %v742, %v758
        %v760 = vlaneseq
        %v761 = vshrl.u32 %v760, 7
        %v762 = vsub.s32 4, %v761
        %v763 = vrot.slane %v742, %v762
        %v764 = vlaneseq
        %v765 = vshrl.u32 %v764, 7
        %v766 = vsub.s32 5, %v765
        %v767 = vrot.slane %v742, %v766
        %v774 = vmul.f32 %v736, %v747
        %v775 = vmul.f32 %v737, %v751
        %v776 = vmul.f32 %v738, %v755
        %v777 = vmul.f32 %v739, %v759
        %v778 = vmul.f32 %v740, %v763
        %v779 = vmul.f32 %v741, %v767
        %v780 = vmul.f32 %v774, %v774
        %v781 = vmul.f32 %v775, %v775
        %v782 = vmul.f32 %v776, %v776
        %v783 = vmul.f32 %v777, %v777
        %v784 = vmul.f32 %v778, %v778
        %v785 = vmul.f32 %v779, %v779
        %v786 = vld [vmem:[#allocation3] sm:$0x3f]
        %v787 = vrot.slane %v780, 4
        %v788 = vadd.f32 %v780, %v787
        %v789 = vrot.slane %v788, 2
        %v790 = vadd.f32 %v788, %v789
        %v791 = vrot.slane %v790, 1
        %v792 = vadd.f32 %v790, %v791
        %v793 = vrot.slane %v781, 4
        %v794 = vadd.f32 %v781, %v793
        %v795 = vrot.slane %v794, 2
        %v796 = vadd.f32 %v794, %v795
        %v797 = vrot.slane %v796, 1
        %v798 = vadd.f32 %v796, %v797
        %v799 = vrot.slane %v782, 4
        %v800 = vadd.f32 %v782, %v799
        %v801 = vrot.slane %v800, 2
        %v802 = vadd.f32 %v800, %v801
        %v803 = vrot.slane %v802, 1
        %v804 = vadd.f32 %v802, %v803
        %v805 = vrot.slane %v783, 4
        %v806 = vadd.f32 %v783, %v805
        %v807 = vrot.slane %v806, 2
        %v808 = vadd.f32 %v806, %v807
        %v809 = vrot.slane %v808, 1
        %v810 = vadd.f32 %v808, %v809
        %v811 = vrot.slane %v784, 4
        %v812 = vadd.f32 %v784, %v811
        %v813 = vrot.slane %v812, 2
        %v814 = vadd.f32 %v812, %v813
        %v815 = vrot.slane %v814, 1
        %v816 = vadd.f32 %v814, %v815
        %v817 = vrot.slane %v785, 4
        %v818 = vadd.f32 %v785, %v817
        %v819 = vrot.slane %v818, 2
        %v820 = vadd.f32 %v818, %v819
        %v821 = vrot.slane %v820, 1
        %v822 = vadd.f32 %v820, %v821
        %v829 = vcombine.low %v792, %v798
        %v830 = vcombine.low %v804, %v810
        %v831 = vcombine.low %v816, %v822
        %v833 = vunpack.c.l.s4 1966171168
        %v834 = vunpack.c.0.s8 %v833
        %v835 = vlaneseq
        %v836 = vshrl.u32 %v835, 7
        %v837 = vsub.s32 %v834, %v836
        %v838 = vrot.slane %v829, %v837
        %v840 = vunpack.c.l.s4 1966171168
        %v841 = vunpack.c.0.s8 %v840
        %v842 = vlaneseq
        %v843 = vshrl.u32 %v842, 7
        %v844 = vsub.s32 %v841, %v843
        %v845 = vrot.slane %v830, %v844
        %v847 = vunpack.c.l.s4 1966171168
        %v848 = vunpack.c.0.s8 %v847
        %v849 = vlaneseq
        %v850 = vshrl.u32 %v849, 7
        %v851 = vsub.s32 %v848, %v850
        %v852 = vrot.slane %v831, %v851
        %v853 = vcombine.low %v838, %v845
        %v855 = vunpack.c.l.s4 1966171168
        %v856 = vunpack.c.0.s8 %v855
        %v857 = vlaneseq
        %v858 = vshrl.u32 %v857, 7
        %v859 = vsub.s32 %v856, %v858
        %v860 = vrot.slane %v853, %v859
        %v862 = vunpack.c.l.s4 1966171168
        %v863 = vunpack.c.0.s8 %v862
        %v864 = vlaneseq
        %v865 = vshrl.u32 %v864, 7
        %v866 = vsub.s32 %v863, %v865
        %v867 = vrot.slane %v852, %v866
        %v868 = vcombine.low %v860, %v867
        %v870 = vadd.f32 %v786, %v868
        %v871 = vlaneseq
        %vm872 = vcmp.ge.s32.totalorder %v871, 0
        %vm873 = vcmp.lt.s32.totalorder %v871, 768
        %vm874 = vmand %vm872, %vm873
        %875 = vst.msk [vmem:[#allocation3] sm:$0x3f] %vm874, %v870
        %p876 = scmp.eq.s32.totalorder %s25, 1
        // Predicated region
        $region93: #{tpu_custom_call.1} parent=63 // pred_check
          %p877 = pneg %p876
        $region94: #{tpu_custom_call.1} parent=63 // pred_check_branch
          %879 = sbr.rel (%p877) target = $region96
        $region95: #{tpu_custom_call.1} parent=63 // pred_region
          %v880 = vld [vmem:[#allocation4] sm:$0xff]
          %v881 = vld [vmem:[#allocation4 + $0x8] sm:$0xff]
          %v882 = vld [vmem:[#allocation7] sm:$0xff]
          %v883 = vld [vmem:[#allocation7 + $0x8] sm:$0xff]
          %v884 = vsub.f32 %v880, %v882
          %v885 = vsub.f32 %v881, %v883
          %v886 = vld [vmem:[%s4] sm:$0x1]
          %v888 = vlaneseq
          %v889 = vshrl.u32 %v888, 7
          %v890 = vsub.s32 0, %v889
          %v891 = vrot.slane %v886, %v890
          %v893 = vmul.f32 %v891, %v884
          %v894 = vmul.f32 %v891, %v885
          %v895 = vmul.f32 %v893, %v884
          %v896 = vmul.f32 %v894, %v885
          %v897 = vadd.f32 %v895, %v896
          %898 = vadd.xlane.f32.xlu0 %v897
          %v899 = vpop.xlane.xlu0 %898
          %v900 = vrot.slane %v899, 4
          %v901 = vadd.f32 %v899, %v900
          %v902 = vrot.slane %v901, 2
          %v903 = vadd.f32 %v901, %v902
          %v904 = vrot.slane %v903, 1
          %v905 = vadd.f32 %v903, %v904
          %s906 = vtos %v905
          %v907 = vld [vmem:[#allocation2] sm:$0xff]
          %v909 = vlaneseq
          %v910 = vshrl.u32 %v909, 7
          %v911 = vsub.s32 0, %v910
          %v912 = vrot.slane %v907, %v911
          %v913 = vlaneseq
          %v914 = vshrl.u32 %v913, 7
          %v915 = vsub.s32 1, %v914
          %v916 = vrot.slane %v907, %v915
          %v917 = vlaneseq
          %v918 = vshrl.u32 %v917, 7
          %v919 = vsub.s32 2, %v918
          %v920 = vrot.slane %v907, %v919
          %v921 = vlaneseq
          %v922 = vshrl.u32 %v921, 7
          %v923 = vsub.s32 3, %v922
          %v924 = vrot.slane %v907, %v923
          %v925 = vlaneseq
          %v926 = vshrl.u32 %v925, 7
          %v927 = vsub.s32 4, %v926
          %v928 = vrot.slane %v907, %v927
          %v929 = vlaneseq
          %v930 = vshrl.u32 %v929, 7
          %v931 = vsub.s32 5, %v930
          %v932 = vrot.slane %v907, %v931
          %v933 = vlaneseq
          %v934 = vshrl.u32 %v933, 7
          %v935 = vsub.s32 6, %v934
          %v936 = vrot.slane %v907, %v935
          %v937 = vlaneseq
          %v938 = vshrl.u32 %v937, 7
          %v939 = vsub.s32 7, %v938
          %v940 = vrot.slane %v907, %v939
          %vm949 = vcmask 1040384
          %v950 = vsel %vm949, %v912, 0.0
          %v951 = vsel %vm949, %v916, 0.0
          %v952 = vadd.f32 %v950, %v951
          %v953 = vsel %vm949, %v920, 0.0
          %v954 = vadd.f32 %v952, %v953
          %v955 = vsel %vm949, %v924, 0.0
          %v956 = vadd.f32 %v954, %v955
          %v957 = vsel %vm949, %v928, 0.0
          %v958 = vadd.f32 %v956, %v957
          %v959 = vsel %vm949, %v932, 0.0
          %v960 = vadd.f32 %v958, %v959
          %v961 = vsel %vm949, %v936, 0.0
          %v962 = vadd.f32 %v960, %v961
          %v963 = vsel %vm949, %v940, 0.0
          %v964 = vadd.f32 %v962, %v963
          %965 = vadd.xlane.f32.xlu0 %v964
          %v966 = vpop.xlane.xlu0 %965
          %v967 = vrot.slane %v966, 4
          %v968 = vadd.f32 %v966, %v967
          %v969 = vrot.slane %v968, 2
          %v970 = vadd.f32 %v968, %v969
          %v971 = vrot.slane %v970, 1
          %v972 = vadd.f32 %v970, %v971
          %s973 = vtos %v972
          %v974 = vrcp.pop 16.0
          %s975 = vtos %v974
          %s976 = smul.f32 %s973, %s975
          %s977 = smul.f32 %s976, 0.1
          %s978 = sadd.f32 %s906, %s977
          %v979 = vld [vmem:[#allocation3] sm:$0x3f]
          %v981 = vlaneseq
          %v982 = vshrl.u32 %v981, 7
          %v983 = vsub.s32 0, %v982
          %v984 = vrot.slane %v979, %v983
          %v985 = vlaneseq
          %v986 = vshrl.u32 %v985, 7
          %v987 = vsub.s32 1, %v986
          %v988 = vrot.slane %v979, %v987
          %v989 = vlaneseq
          %v990 = vshrl.u32 %v989, 7
          %v991 = vsub.s32 2, %v990
          %v992 = vrot.slane %v979, %v991
          %v993 = vlaneseq
          %v994 = vshrl.u32 %v993, 7
          %v995 = vsub.s32 3, %v994
          %v996 = vrot.slane %v979, %v995
          %v997 = vlaneseq
          %v998 = vshrl.u32 %v997, 7
          %v999 = vsub.s32 4, %v998
          %v1000 = vrot.slane %v979, %v999
          %v1001 = vlaneseq
          %v1002 = vshrl.u32 %v1001, 7
          %v1003 = vsub.s32 5, %v1002
          %v1004 = vrot.slane %v979, %v1003
          %v1011 = vsel %vm949, %v984, 0.0
          %v1012 = vsel %vm949, %v988, 0.0
          %v1013 = vadd.f32 %v1011, %v1012
          %v1014 = vsel %vm949, %v992, 0.0
          %v1015 = vadd.f32 %v1013, %v1014
          %v1016 = vsel %vm949, %v996, 0.0
          %v1017 = vadd.f32 %v1015, %v1016
          %v1018 = vsel %vm949, %v1000, 0.0
          %v1019 = vadd.f32 %v1017, %v1018
          %v1020 = vsel %vm949, %v1004, 0.0
          %v1021 = vadd.f32 %v1019, %v1020
          %1022 = vadd.xlane.f32.xlu0 %v1021
          %v1023 = vpop.xlane.xlu0 %1022
          %v1024 = vrot.slane %v1023, 4
          %v1025 = vadd.f32 %v1023, %v1024
          %v1026 = vrot.slane %v1025, 2
          %v1027 = vadd.f32 %v1025, %v1026
          %v1028 = vrot.slane %v1027, 1
          %v1029 = vadd.f32 %v1027, %v1028
          %s1030 = vtos %v1029
          %v1031 = vrcp.pop 16.0
          %s1032 = vtos %v1031
          %s1033 = smul.f32 %s1030, %s1032
          %s1034 = smul.f32 %s1033, 0.01
          %s1035 = sadd.f32 %s978, %s1034
          %v1036 = vld [vmem:[%s0] sm:$0xff]
          %v1037 = vld [vmem:[%s0 + $0x8] sm:$0xff]
          %v1038 = vld [vmem:[%s1] sm:$0xff]
          %v1039 = vld [vmem:[%s1 + $0x8] sm:$0xff]
          %vm1040 = vcmask 130048
          %v1041 = vsel %vm1040, %v1036, -inf
          %1042 = vmax.xlane.f32.xlu0 %v1041
          %v1043 = vpop.xlane.xlu0 %1042
          %v1044 = vsel %vm1040, %v1037, -inf
          %1045 = vmax.xlane.f32.xlu0 %v1044
          %v1046 = vpop.xlane.xlu0 %1045
          %v1047 = vsub.f32 %v1036, %v1043
          %v1048 = vsub.f32 %v1037, %v1046
          %v1049 = vmul.f32 %v1047, 1.442695
          %v1050 = vpow.pop %v1049
          %v1051 = vmul.f32 %v1048, 1.442695
          %v1052 = vpow.pop %v1051
          %v1053 = vsel %vm1040, %v1050, 0.0
          %1054 = vadd.xlane.f32.xlu0 %v1053
          %v1055 = vpop.xlane.xlu0 %1054
          %v1056 = vsel %vm1040, %v1052, 0.0
          %1057 = vadd.xlane.f32.xlu0 %v1056
          %v1058 = vpop.xlane.xlu0 %1057
          %v1059 = vlog2.pop %v1055
          %v1060 = vmul.f32 %v1059, 0.6931472
          %v1061 = vlog2.pop %v1058
          %v1062 = vmul.f32 %v1061, 0.6931472
          %v1063 = vadd.f32 %v1060, %v1043
          %v1064 = vadd.f32 %v1062, %v1046
          %v1065 = vlaneseq
          %v1066 = vand.u32 %v1065, 127
          %1067 = vset.pattern.permute.xlu0 0
          %1068 = vperm.xlu0 %1067, %v1038
          %v1069 = vpop.permute.xlu0 %1068
          %1070 = vset.pattern.permute.xlu0 0
          %1071 = vperm.xlu0 %1070, %v1039
          %v1072 = vpop.permute.xlu0 %1071
          %vm1073 = vcmp.eq.s32.totalorder %v1066, %v1069
          %vm1074 = vcmp.eq.s32.totalorder %v1066, %v1072
          %v1075 = vsel %vm1073, %v1036, 0.0
          %v1076 = vsel %vm1074, %v1037, 0.0
          %v1077 = vsel %vm1040, %v1075, 0.0
          %1078 = vadd.xlane.f32.xlu0 %v1077
          %v1079 = vpop.xlane.xlu0 %1078
          %v1080 = vsel %vm1040, %v1076, 0.0
          %1081 = vadd.xlane.f32.xlu0 %v1080
          %v1082 = vpop.xlane.xlu0 %1081
          %v1083 = vsub.f32 %v1063, %v1079
          %v1084 = vsub.f32 %v1064, %v1082
          %vm1085 = vcmask 7168
          %v1086 = vsel %vm1085, %v1083, 0.0
          %v1087 = vsel %vm1085, %v1084, 0.0
          %v1088 = vadd.f32 %v1086, %v1087
          %1089 = vadd.xlane.f32.xlu0 %v1088
          %v1090 = vpop.xlane.xlu0 %1089
          %v1091 = vrot.slane %v1090, 4
          %v1092 = vadd.f32 %v1090, %v1091
          %v1093 = vrot.slane %v1092, 2
          %v1094 = vadd.f32 %v1092, %v1093
          %v1095 = vrot.slane %v1094, 1
          %v1096 = vadd.f32 %v1094, %v1095
          %s1097 = vtos %v1096
          %v1098 = vrcp.pop 16.0
          %s1099 = vtos %v1098
          %s1100 = smul.f32 %s1097, %s1099
          %s1101 = smul.f32 %s1100, 0.1
          %s1102 = sadd.f32 %s1035, %s1101
          %s1103 = scalar_lea.smem [#allocation13], 0
          %1104 = sst [smem:[%s1103]] %s1102
        $region96: #{tpu_custom_call.1} parent=63 // pred_fallthru
          _
        // Predicated region
        $region97: #{tpu_custom_call.1} parent=63 // pred_check
          %p1105 = pneg %p289
        $region98: #{tpu_custom_call.1} parent=63 // pred_check_branch
          %1107 = sbr.rel (%p1105) target = $region100
        $region99: #{tpu_custom_call.1} parent=63 // pred_region
          %s1109 = ssub.s32 16, 16
          %1110 = vsyncadd [#allocation6], %s1109
          %1113 = dma.smem_to_hbm [#allocation13], 16, %s11, [#allocation6]
        $region100: #{tpu_custom_call.1} parent=63 // pred_fallthru
          _
        // Predicated region
        $region101: #{tpu_custom_call.1} parent=63 // pred_check
          %p1114 = pneg %p289
        $region102: #{tpu_custom_call.1} parent=63 // pred_check_branch
          %1116 = sbr.rel (%p1114) target = $region104
        $region103: #{tpu_custom_call.1} parent=63 // pred_region
          %1117 = dma.done [#allocation6], 16
        $region104: #{tpu_custom_call.1} parent=63 // pred_fallthru
          _
        %1118 = sfence
      $region64: #{tpu_custom_call.1} parent=5 // pred_fallthru
        _
      %p1119 = scmp.le.s32.totalorder 2, %s20
      // Predicated region
      $region105: #{tpu_custom_call.1} parent=5 // pred_check
        %p1120 = pneg %p1119
      $region106: #{tpu_custom_call.1} parent=5 // pred_check_branch
        %1122 = sbr.rel (%p1120) target = $region108
      $region107: #{tpu_custom_call.1} parent=5 // pred_region
        %s1123 = ssub.s32 %s20, 2
      $region108: #{tpu_custom_call.1} parent=5 // pred_fallthru
        _
    $region6: #{tpu_custom_call.1} parent=1 // loop_footer
      %s24 = sadd.s32 1, %s20
    $region7: #{tpu_custom_call.1} parent=1 // loop_footer_branch
      %19 = sbr.rel target = $region3
    $region8: #{tpu_custom_call.1} parent=1 // loop_exit
      _
    %1124 = vsyncpa [#allocation5], 1
    %s1125 = scalar_lea.sflag [#allocation5], 1
    %1126 = vsyncpa %s1125, 1
    %1127 = vsyncpa [#allocation8], 1
    %1128 = vsyncpa [#allocation6], 1
    %s1129 = scalar_lea.sflag [#allocation6], 1
    %1130 = vsyncpa %s1129, 1

</llo_original>
